<compile_context>
chip_gen: v6e
topology: v6e:2x2x1
jax: 0.10.0
libtpu: 0.0.40
codegen_flags: <defaults>
</compile_context>

<pallas_src>
import jax
import jax.numpy as jnp
from jax import lax
from jax.experimental import pallas as pl
from jax.experimental.pallas import tpu as pltpu

LANE = 128


def _make_tversky_kernel(nclass, tile, hw, n_tiles, dense_target):
    """Kernel for one (batch, lane-tile) block.

    acc_ref (VMEM scratch, persists across the inner grid axis): (3, C, tile)
      [0] = sum(p * t)   [1] = sum(p)   [2] = sum(t)
    out_ref block: (1, 3, C, 128) -- lane-reduced partials, written once per batch.
    """
    needs_mask = (hw % tile) != 0

    def kernel(p_ref, t_ref, out_ref, acc_ref):
        i = pl.program_id(1)

        @pl.when(i == 0)
        def _():
            acc_ref[...] = jnp.zeros_like(acc_ref)

        logits = p_ref[0].astype(jnp.float32)                     # (C, tile)
        m = jnp.max(logits, axis=0, keepdims=True)                # channel softmax
        e = jnp.exp(logits - m)
        p = e * pl.reciprocal(jnp.sum(e, axis=0, keepdims=True), approx=False)

        if dense_target:
            t = t_ref[0].astype(jnp.float32)                      # (C, tile)
        else:
            labels = t_ref[0]                                     # (1, tile) int32
            cls = lax.broadcasted_iota(jnp.int32, (nclass, tile), 0)
            t = (cls == labels).astype(jnp.float32)               # (C, tile) one-hot

        if needs_mask:  # only traced when HW is not a multiple of tile
            lane = lax.broadcasted_iota(jnp.int32, (1, tile), 1)
            valid = (i * tile + lane) < hw
            p = jnp.where(valid, p, 0.0)
            t = jnp.where(valid, t, 0.0)

        acc_ref[0] += p * t
        acc_ref[1] += p
        acc_ref[2] += t

        @pl.when(i == n_tiles - 1)
        def _():
            # Lane-reduce the wide accumulator to one 128-lane slab before the
            # (small) HBM writeback; static slices -> plain VPU adds, no relayout.
            red = acc_ref[:, :, 0:LANE]
            for j in range(1, tile // LANE):
                red = red + acc_ref[:, :, j * LANE:(j + 1) * LANE]
            out_ref[0] = red

    return kernel


def _pick_tile(hw, nclass, pred_itemsize, dense_target):
    """Largest lane tile (<=4096) whose double-buffered blocks + accumulator
    stay well under the scoped-VMEM limit on all generations (v5e/v6e/v7x)."""
    hw128 = pl.cdiv(hw, LANE) * LANE
    c_pad = ((max(nclass, 8) + 7) // 8) * 8          # sublane-padded channel count
    tgt_bytes = c_pad * pred_itemsize if dense_target else 4
    per_lane = (2 * c_pad * pred_itemsize            # predict blocks, double buffered
                + 2 * tgt_bytes                      # target blocks, double buffered
                + 3 * c_pad * 4)                     # accumulator scratch (f32)
    budget = 8 << 20
    max_tile = max(LANE, (budget // per_lane) // LANE * LANE)
    return int(min(4096, max_tile, hw128))


def tversky_focal_loss(predict, target, weight=None, ignore_index=-100,
                       smooth=1.0, alpha=0.7, gamma=1.33):
    """predict: [N, C, *] logits (native dtype).
    target: int labels [N, *] or a dense target with the same shape as predict."""
    n, nclass = predict.shape[0], predict.shape[1]

    dense_target = (predict.shape == target.shape)
    if not dense_target and predict.ndim != 4:
        raise ValueError('predict shape not applicable.')

    hw = 1
    for d in predict.shape[2:]:
        hw *= d

    pred3 = predict.reshape(n, nclass, hw)                 # pure reshape, no relayout
    if dense_target:
        tgt3 = target.reshape(n, nclass, hw)
    else:
        tgt3 = target.astype(jnp.int32).reshape(n, 1, hw)

    tile = _pick_tile(hw, nclass, pred3.dtype.itemsize, dense_target)
    hwp = pl.cdiv(hw, tile) * tile
    if hwp != hw:
        pred3 = jnp.pad(pred3, ((0, 0), (0, 0), (0, hwp - hw)))
        if dense_target:
            tgt3 = jnp.pad(tgt3, ((0, 0), (0, 0), (0, hwp - hw)))
        else:
            tgt3 = jnp.pad(tgt3, ((0, 0), (0, 0), (0, hwp - hw)), constant_values=-1)
    n_tiles = hwp // tile

    kernel = _make_tversky_kernel(nclass, tile, hw, n_tiles, dense_target)
    tgt_block = (1, nclass, tile) if dense_target else (1, 1, tile)

    partials = pl.pallas_call(
        kernel,
        out_shape=jax.ShapeDtypeStruct((n, 3, nclass, LANE), jnp.float32),
        grid_spec=pltpu.PrefetchScalarGridSpec(
            num_scalar_prefetch=0,
            grid=(n, n_tiles),
            in_specs=[pl.BlockSpec((1, nclass, tile), lambda b, i: (b, 0, i)),
                      pl.BlockSpec(tgt_block, lambda b, i: (b, 0, i))],
            out_specs=pl.BlockSpec((1, 3, nclass, LANE), lambda b, i: (b, 0, 0, 0)),
            scratch_shapes=[pltpu.VMEM((3, nclass, tile), jnp.float32)],
        ),
        compiler_params=pltpu.CompilerParams(
            dimension_semantics=("parallel", "arbitrary"),
            vmem_limit_bytes=32 << 20),
    )(pred3, tgt3)

    sums = jnp.sum(partials, axis=(0, 3))                  # (3, C)
    tp, sp, st = sums[0], sums[1], sums[2]
    fn = st - tp                                           # sum((1-p)*t)
    fp = sp - tp                                           # sum(p*(1-t))
    beta = 1.0 - alpha
    num = tp + smooth
    den = tp + alpha * fn + beta * fp + smooth
    per_class = jnp.power(1.0 - num / den, 1.0 / gamma)    # (C,)

    if weight is None:
        w = jnp.full((nclass,), 1.0 / nclass, dtype=jnp.float32)
    else:
        w = jnp.asarray(weight, dtype=jnp.float32)
        if ignore_index >= 0 and w.shape[0] == nclass - 1:
            # splice a zero weight at ignore_index (matches the PyTorch forward)
            w = jnp.concatenate([w[:ignore_index],
                                 jnp.zeros((1,), jnp.float32),
                                 w[ignore_index:]])
    if 0 <= ignore_index < nclass:
        # skip the ignored class' term (same as the PyTorch class loop skip)
        per_class = jnp.where(jnp.arange(nclass) == ignore_index, 0.0, per_class)
    # TODO(synk): pixels labeled ignore_index are only excluded via their all-zero
    # one-hot row (same as the reference F.one_hot behavior), not removed from sum(p).
    return jnp.sum(w * per_class)


def _tversky_focal_loss_ref(predict, target, smooth=1.0, alpha=0.7, gamma=1.33):
    """Pure-JAX reference mirroring the PyTorch forward (default weight, ignore_index=-100)."""
    c = predict.shape[1]
    p = jax.nn.softmax(predict.astype(jnp.float32), axis=1)
    t = jnp.moveaxis(jax.nn.one_hot(target, c, dtype=jnp.float32), -1, 1)
    beta = 1.0 - alpha
    total = 0.0
    for i in range(c):
        pi = p[:, i].reshape(-1)
        ti = t[:, i].reshape(-1)
        tp = jnp.sum(pi * ti)
        num = tp + smooth
        den = tp + alpha * jnp.sum((1.0 - pi) * ti) + beta * jnp.sum(pi * (1.0 - ti)) + smooth
        total = total + (1.0 / c) * jnp.power(1.0 - num / den, 1.0 / gamma)
    return total


if __name__ == "__main__":
    key = jax.random.PRNGKey(0)
    kp, kt, kp2, kt2 = jax.random.split(key, 4)

    # Main case: N=2, C=4, H=W=16 (HW multiple of 128 -> no padding path).
    N, C, H, W = 2, 4, 16, 16
    predict = jax.random.normal(kp, (N, C, H, W), dtype=jnp.float32)
    target = jax.random.randint(kt, (N, H, W), 0, C, dtype=jnp.int32)

    loss = jax.block_until_ready(tversky_focal_loss(predict, target))
    ref = _tversky_focal_loss_ref(predict, target)
    assert jnp.allclose(loss, ref, rtol=1e-5, atol=1e-5), (loss, ref)

    # Dense (same-shape) target branch must agree with the int-label branch.
    target_oh = jnp.moveaxis(jax.nn.one_hot(target, C, dtype=jnp.float32), -1, 1)
    loss_dense = jax.block_until_ready(tversky_focal_loss(predict, target_oh))
    assert jnp.allclose(loss_dense, ref, rtol=1e-5, atol=1e-5), (loss_dense, ref)

    # Non-128-divisible spatial size exercises the in-kernel padding mask.
    H2, W2 = 10, 10
    predict2 = jax.random.normal(kp2, (N, C, H2, W2), dtype=jnp.float32)
    target2 = jax.random.randint(kt2, (N, H2, W2), 0, C, dtype=jnp.int32)
    loss2 = jax.block_until_ready(tversky_focal_loss(predict2, target2))
    ref2 = _tversky_focal_loss_ref(predict2, target2)
    assert jnp.allclose(loss2, ref2, rtol=1e-5, atol=1e-5), (loss2, ref2)

    print("KERNEL_OK")
</pallas_src>

<mosaic_0001>
module attributes {stable_mosaic.version = 11 : i64} {
  func.func @kernel(%arg0: i32, %arg1: i32, %arg2: memref<1x4x256xf32, #tpu.memory_space<vmem>>, %arg3: memref<1x1x256xi32, #tpu.memory_space<vmem>>, %arg4: memref<1x3x4x128xf32, #tpu.memory_space<vmem>>, %arg5: memref<3x4x256xf32, #tpu.memory_space<vmem>>) attributes {dimension_semantics = [#tpu.dimension_semantics<parallel>, #tpu.dimension_semantics<arbitrary>], iteration_bounds = array<i64: 2, 1>, scalar_prefetch = 0 : i64, scratch_operands = 1 : i64, tpu.core_type = #tpu.core_type<tc>, window_params = [{transform_indices = @transform_0, window_bounds = array<i64: 1, 4, 256>}, {transform_indices = @transform_1, window_bounds = array<i64: 1, 1, 256>}, {transform_indices = @transform_2, window_bounds = array<i64: 1, 3, 4, 128>}]} {
    %c0_i32 = arith.constant 0 : i32
    %0 = arith.cmpi eq, %arg1, %c0_i32 : i32
    %1 = arith.extui %0 : i1 to i32
    %c0_i32_0 = arith.constant 0 : i32
    %2 = arith.cmpi ne, %1, %c0_i32_0 : i32
    scf.if %2 {
      %cst_25 = arith.constant 0.000000e+00 : f32
      %44 = vector.broadcast %cst_25 : f32 to vector<3x4x256xf32>
      %c0_26 = arith.constant 0 : index
      %c0_27 = arith.constant 0 : index
      %c0_28 = arith.constant 0 : index
      %45 = vector.load %arg5[%c0_26, %c0_27, %c0_28] : memref<3x4x256xf32, #tpu.memory_space<vmem>>, vector<3x4x256xf32>
      tpu.vector_store %arg5[%c0_26, %c0_27, %c0_28], %44 {strides = array<i32>} : memref<3x4x256xf32, #tpu.memory_space<vmem>>, vector<3x4x256xf32>,
    } else {
    }
    %c0 = arith.constant 0 : index
    %c0_1 = arith.constant 0 : index
    %c0_2 = arith.constant 0 : index
    %3 = vector.load %arg2[%c0, %c0_1, %c0_2] : memref<1x4x256xf32, #tpu.memory_space<vmem>>, vector<1x4x256xf32>
    %4 = vector.shape_cast %3 : vector<1x4x256xf32> to vector<4x256xf32>
    %cst = arith.constant dense<0xFF800000> : vector<256xf32>
    %5 = vector.multi_reduction <maximumf>, %4, %cst [0] : vector<4x256xf32> to vector<256xf32>
    %6 = vector.shape_cast %5 : vector<256xf32> to vector<1x256xf32>
    %7 = vector.broadcast %6 : vector<1x256xf32> to vector<4x256xf32>
    %8 = arith.subf %4, %7 : vector<4x256xf32>
    %9 = math.exp %8 : vector<4x256xf32>
    %cst_3 = arith.constant dense<0.000000e+00> : vector<256xf32>
    %10 = vector.multi_reduction <add>, %9, %cst_3 [0] : vector<4x256xf32> to vector<256xf32>
    %11 = vector.shape_cast %10 : vector<256xf32> to vector<1x256xf32>
    %12 = tpu.reciprocal %11 : vector<1x256xf32> -> vector<1x256xf32>
    %13 = vector.broadcast %12 : vector<1x256xf32> to vector<4x256xf32>
    %14 = arith.mulf %9, %13 : vector<4x256xf32>
    %c0_4 = arith.constant 0 : index
    %c0_5 = arith.constant 0 : index
    %c0_6 = arith.constant 0 : index
    %15 = vector.load %arg3[%c0_4, %c0_5, %c0_6] : memref<1x1x256xi32, #tpu.memory_space<vmem>>, vector<1x1x256xi32>
    %16 = vector.shape_cast %15 : vector<1x1x256xi32> to vector<1x256xi32>
    %17 = tpu.iota {dimensions = array<i32: 0>} : vector<4x256xi32>
    %18 = vector.broadcast %16 : vector<1x256xi32> to vector<4x256xi32>
    %19 = arith.cmpi eq, %17, %18 : vector<4x256xi32>
    %20 = arith.extui %19 : vector<4x256xi1> to vector<4x256xi32>
    %21 = arith.sitofp %20 : vector<4x256xi32> to vector<4x256xf32>
    %c0_7 = arith.constant 0 : index
    %c0_8 = arith.constant 0 : index
    %c0_9 = arith.constant 0 : index
    %22 = vector.load %arg5[%c0_7, %c0_8, %c0_9] : memref<3x4x256xf32, #tpu.memory_space<vmem>>, vector<1x4x256xf32>
    %23 = vector.shape_cast %22 : vector<1x4x256xf32> to vector<4x256xf32>
    %24 = arith.mulf %14, %21 : vector<4x256xf32>
    %25 = arith.addf %23, %24 : vector<4x256xf32>
    %c0_10 = arith.constant 0 : index
    %c0_11 = arith.constant 0 : index
    %c0_12 = arith.constant 0 : index
    %26 = vector.load %arg5[%c0_10, %c0_11, %c0_12] : memref<3x4x256xf32, #tpu.memory_space<vmem>>, vector<1x4x256xf32>
    %27 = vector.shape_cast %26 : vector<1x4x256xf32> to vector<4x256xf32>
    %28 = vector.shape_cast %25 : vector<4x256xf32> to vector<1x4x256xf32>
    tpu.vector_store %arg5[%c0_10, %c0_11, %c0_12], %28 {strides = array<i32>} : memref<3x4x256xf32, #tpu.memory_space<vmem>>, vector<1x4x256xf32>,
    %c1 = arith.constant 1 : index
    %c0_13 = arith.constant 0 : index
    %c0_14 = arith.constant 0 : index
    %29 = vector.load %arg5[%c1, %c0_13, %c0_14] : memref<3x4x256xf32, #tpu.memory_space<vmem>>, vector<1x4x256xf32>
    %30 = vector.shape_cast %29 : vector<1x4x256xf32> to vector<4x256xf32>
    %31 = arith.addf %30, %14 : vector<4x256xf32>
    %c1_15 = arith.constant 1 : index
    %c0_16 = arith.constant 0 : index
    %c0_17 = arith.constant 0 : index
    %32 = vector.load %arg5[%c1_15, %c0_16, %c0_17] : memref<3x4x256xf32, #tpu.memory_space<vmem>>, vector<1x4x256xf32>
    %33 = vector.shape_cast %32 : vector<1x4x256xf32> to vector<4x256xf32>
    %34 = vector.shape_cast %31 : vector<4x256xf32> to vector<1x4x256xf32>
    tpu.vector_store %arg5[%c1_15, %c0_16, %c0_17], %34 {strides = array<i32>} : memref<3x4x256xf32, #tpu.memory_space<vmem>>, vector<1x4x256xf32>,
    %c2 = arith.constant 2 : index
    %c0_18 = arith.constant 0 : index
    %c0_19 = arith.constant 0 : index
    %35 = vector.load %arg5[%c2, %c0_18, %c0_19] : memref<3x4x256xf32, #tpu.memory_space<vmem>>, vector<1x4x256xf32>
    %36 = vector.shape_cast %35 : vector<1x4x256xf32> to vector<4x256xf32>
    %37 = arith.addf %36, %21 : vector<4x256xf32>
    %c2_20 = arith.constant 2 : index
    %c0_21 = arith.constant 0 : index
    %c0_22 = arith.constant 0 : index
    %38 = vector.load %arg5[%c2_20, %c0_21, %c0_22] : memref<3x4x256xf32, #tpu.memory_space<vmem>>, vector<1x4x256xf32>
    %39 = vector.shape_cast %38 : vector<1x4x256xf32> to vector<4x256xf32>
    %40 = vector.shape_cast %37 : vector<4x256xf32> to vector<1x4x256xf32>
    tpu.vector_store %arg5[%c2_20, %c0_21, %c0_22], %40 {strides = array<i32>} : memref<3x4x256xf32, #tpu.memory_space<vmem>>, vector<1x4x256xf32>,
    %c0_i32_23 = arith.constant 0 : i32
    %41 = arith.cmpi eq, %arg1, %c0_i32_23 : i32
    %42 = arith.extui %41 : i1 to i32
    %c0_i32_24 = arith.constant 0 : i32
    %43 = arith.cmpi ne, %42, %c0_i32_24 : i32
    scf.if %43 {
      %c0_25 = arith.constant 0 : index
      %c0_26 = arith.constant 0 : index
      %c0_27 = arith.constant 0 : index
      %44 = vector.load %arg5[%c0_25, %c0_26, %c0_27] : memref<3x4x256xf32, #tpu.memory_space<vmem>>, vector<3x4x128xf32>
      %c0_28 = arith.constant 0 : index
      %c0_29 = arith.constant 0 : index
      %c128 = arith.constant 128 : index
      %45 = vector.load %arg5[%c0_28, %c0_29, %c128] : memref<3x4x256xf32, #tpu.memory_space<vmem>>, vector<3x4x128xf32>
      %46 = arith.addf %44, %45 : vector<3x4x128xf32>
      %c0_30 = arith.constant 0 : index
      %c0_31 = arith.constant 0 : index
      %c0_32 = arith.constant 0 : index
      %c0_33 = arith.constant 0 : index
      %47 = vector.load %arg4[%c0_30, %c0_31, %c0_32, %c0_33] : memref<1x3x4x128xf32, #tpu.memory_space<vmem>>, vector<1x3x4x128xf32>
      %48 = vector.shape_cast %47 : vector<1x3x4x128xf32> to vector<3x4x128xf32>
      %49 = vector.shape_cast %46 : vector<3x4x128xf32> to vector<1x3x4x128xf32>
      tpu.vector_store %arg4[%c0_30, %c0_31, %c0_32, %c0_33], %49 {strides = array<i32>} : memref<1x3x4x128xf32, #tpu.memory_space<vmem>>, vector<1x3x4x128xf32>,
    } else {
    }
    return
  }
  func.func @transform_0(%arg0: i32, %arg1: i32) -> (i32, i32, i32) {
    %c0_i32 = arith.constant 0 : i32
    %c0_i32_0 = arith.constant 0 : i32
    return %arg0, %c0_i32, %arg1 : i32, i32, i32
  }
  func.func @transform_1(%arg0: i32, %arg1: i32) -> (i32, i32, i32) {
    %c0_i32 = arith.constant 0 : i32
    %c0_i32_0 = arith.constant 0 : i32
    return %arg0, %c0_i32, %arg1 : i32, i32, i32
  }
  func.func @transform_2(%arg0: i32, %arg1: i32) -> (i32, i32, i32, i32) {
    %c0_i32 = arith.constant 0 : i32
    %c0_i32_0 = arith.constant 0 : i32
    %c0_i32_1 = arith.constant 0 : i32
    %c0_i32_2 = arith.constant 0 : i32
    return %arg0, %c0_i32, %c0_i32_0, %c0_i32_1 : i32, i32, i32, i32
  }
}

</mosaic_0001>

<llo_original>
// kernel: tpu_custom_call.1
$region0: #{tpu_custom_call.1}
  #allocation0 [shape = 'u32[]', space=smem, size = 0x4, offset = 0x4, fixed_abs, tag = 'smem constant byte address 0x4 - core index']
  #allocation1 [shape = 'u32[144,128]{1,0:T(1,128)}', space=vmem, size = 0x12000, scoped, tag = 'internal scratch']
  #allocation2 [shape = 'f32[3,4,256]{2,1,0:T(4,128)}', space=vmem, size = 0x3000, scoped, tag = 'scratch operand']
  %s0 = inlined_call_operand.hbm [shape: f32[2,4,256], index: 0, kind: input, shape index: {}]
  %s1 = inlined_call_operand.hbm [shape: s32[2,1,256], index: 1, kind: input, shape index: {}]
  %s2 = inlined_call_operand.hbm [shape: f32[2,3,4,128], index: 2, kind: output, shape index: {}]
  %s3 = sld [smem:[#allocation0]]
  $region57: #{tpu_custom_call.1} parent=0
    _
  %s5 = ssub.s32 1, %s3
  %s6 = scalar_select 0, %s5, %s3
  $region1: #{tpu_custom_call.1} parent=0
    #allocation3 [shape = 'u8[8192]{0}', space=vmem, size = 0x2000, scoped, tag = 'input window, operand 0']
    #allocation4 [shape = 's32[2]{0}', space=sflag, size = 0x8, scoped, tag = 'scoped memory for tpu_custom_call.1']
    #allocation5 [shape = 's32[2]{0}', space=sflag, size = 0x8, scoped, tag = 'scoped memory for tpu_custom_call.1']
    #allocation6 [shape = 'u8[2048]{0}', space=vmem, size = 0x800, scoped, tag = 'input window, operand 1']
    #allocation7 [shape = 's32[2]{0}', space=sflag, size = 0x8, scoped, tag = 'scoped memory for tpu_custom_call.1']
    #allocation8 [shape = 'u8[12288]{0}', space=vmem, size = 0x3000, scoped, tag = 'output window, operand 0']
    %7 = vsyncpa [#allocation4], 0
    %s8 = scalar_lea.sflag [#allocation4], 1
    %9 = vsyncpa %s8, 0
    %10 = vsyncpa [#allocation7], 0
    %s11 = scalar_lea.sflag [#allocation7], 1
    %12 = vsyncpa %s11, 0
    %13 = vsyncpa [#allocation5], 0
    %s14 = scalar_lea.sflag [#allocation5], 1
    %15 = vsyncpa %s14, 0
    loop: start=0, step=1, limit=4
    $region2: #{tpu_custom_call.1} parent=1 // loop_pre_header
      _
    $region3: #{tpu_custom_call.1} parent=1 // loop_header
      %s17 = sphi 0, %s21
      %p18 = scmp.ge.s32.totalorder %s17, 4
      %s24 = sphi 0, %s36
      %s25 = sphi 0, %s32
      %s26 = sphi 0, %s24
      %s27 = sphi 0, %s25
      %s28 = sphi 0, %s26
      %s29 = sphi 0, %s27
      %s41 = sphi 0, %s43
      %s44 = sphi 0, %s41
      %s45 = sphi 0, %s44
      %s61 = sphi 0, %s45
      %s69 = sphi 0, %s71
      %s72 = sphi 0, %s69
      %s73 = sphi 0, %s72
      %s89 = sphi 0, %s73
      %s95 = sphi 0, %s97
      %s98 = sphi 0, %s95
      %s99 = sphi 0, %s98
      %s115 = sphi 0, %s99
    $region4: #{tpu_custom_call.1} parent=1 // loop_header_branch
      %20 = sbr.rel (%p18) target = $region8
    $region5: #{tpu_custom_call.1} parent=1 // loop_body
      %s22 = ssub.s32 %s17, 1
      %s23 = ssub.s32 %s17, 2
      %s30 = sadd.s32 1, %s25
      %p31 = scmp.ge.s32.totalorder %s30, 1
      %s32 = scalar_select %p31, 0, %s30
      %s33 = sadd.s32 1, %s24
      %s34 = scalar_select %p31, %s33, %s24
      %p35 = scmp.ge.s32.totalorder %s34, 2
      %s36 = scalar_select %p35, 0, %s34
      %s37 = ssub.s32 %s24, %s36
      %s38 = ssub.s32 %s25, %s32
      %s39 = sor.u32 %s37, %s38
      %p40 = scmp.eq.s32.totalorder %s39, 0
      %s42 = sadd.s32 %s41, 1
      %s43 = scalar_select %p40, %s41, %s42
      %p46 = pneg %p40
      %p47 = scmp.eq.s32.totalorder %s17, 1
      %p48 = por %p46, %p47
      %p49 = scmp.ne.s32.totalorder %s41, %s44
      %p50 = scmp.eq.s32.totalorder %s17, 0
      %p51 = por %p49, %p50
      %p52 = scmp.ne.s32.totalorder %s41, %s44
      %p53 = scmp.eq.s32.totalorder %s22, 1
      %p54 = por %p52, %p53
      %p55 = scmp.ne.s32.totalorder %s44, %s45
      %p56 = scmp.eq.s32.totalorder %s22, 0
      %p57 = por %p55, %p56
      %p58 = scmp.ne.s32.totalorder %s44, %s45
      %p59 = scmp.eq.s32.totalorder %s23, 1
      %p60 = por %p58, %p59
      %p62 = scmp.ne.s32.totalorder %s45, %s61
      %p63 = scmp.eq.s32.totalorder %s23, 0
      %p64 = por %p62, %p63
      %s65 = ssub.s32 %s24, %s36
      %s66 = ssub.s32 %s25, %s32
      %s67 = sor.u32 %s65, %s66
      %p68 = scmp.eq.s32.totalorder %s67, 0
      %s70 = sadd.s32 %s69, 1
      %s71 = scalar_select %p68, %s69, %s70
      %p74 = pneg %p68
      %p75 = scmp.eq.s32.totalorder %s17, 1
      %p76 = por %p74, %p75
      %p77 = scmp.ne.s32.totalorder %s69, %s72
      %p78 = scmp.eq.s32.totalorder %s17, 0
      %p79 = por %p77, %p78
      %p80 = scmp.ne.s32.totalorder %s69, %s72
      %p81 = scmp.eq.s32.totalorder %s22, 1
      %p82 = por %p80, %p81
      %p83 = scmp.ne.s32.totalorder %s72, %s73
      %p84 = scmp.eq.s32.totalorder %s22, 0
      %p85 = por %p83, %p84
      %p86 = scmp.ne.s32.totalorder %s72, %s73
      %p87 = scmp.eq.s32.totalorder %s23, 1
      %p88 = por %p86, %p87
      %p90 = scmp.ne.s32.totalorder %s73, %s89
      %p91 = scmp.eq.s32.totalorder %s23, 0
      %p92 = por %p90, %p91
      %s93 = ssub.s32 %s24, %s36
      %p94 = scmp.eq.s32.totalorder %s93, 0
      %s96 = sadd.s32 %s95, 1
      %s97 = scalar_select %p94, %s95, %s96
      %p100 = pneg %p94
      %p101 = scmp.eq.s32.totalorder %s17, 1
      %p102 = por %p100, %p101
      %p103 = scmp.ne.s32.totalorder %s95, %s98
      %p104 = scmp.eq.s32.totalorder %s17, 0
      %p105 = por %p103, %p104
      %p106 = scmp.ne.s32.totalorder %s95, %s98
      %p107 = scmp.eq.s32.totalorder %s22, 1
      %p108 = por %p106, %p107
      %p109 = scmp.ne.s32.totalorder %s98, %s99
      %p110 = scmp.eq.s32.totalorder %s22, 0
      %p111 = por %p109, %p110
      %p112 = scmp.ne.s32.totalorder %s98, %s99
      %p113 = scmp.eq.s32.totalorder %s23, 1
      %p114 = por %p112, %p113
      %p116 = scmp.ne.s32.totalorder %s99, %s115
      %p117 = scmp.eq.s32.totalorder %s23, 0
      %p118 = por %p116, %p117
      %p119 = scmp.le.s32.totalorder 1, %s17
      %p120 = scmp.lt.s32.totalorder %s17, 3
      %p121 = pnand %p119, %p120
      %p122 = pneg %p121
      // Predicated region
      $region9: #{tpu_custom_call.1} parent=5 // pred_check
        _
      $region10: #{tpu_custom_call.1} parent=5 // pred_check_branch
        %124 = sbr.rel (%p121) target = $region12
      $region11: #{tpu_custom_call.1} parent=5 // pred_region
        %s125 = ssub.s32 %s17, 1
      $region12: #{tpu_custom_call.1} parent=5 // pred_fallthru
        _
      %p126 = scmp.lt.s32.totalorder %s17, 2
      // Predicated region
      $region13: #{tpu_custom_call.1} parent=5 // pred_check
        %p127 = pneg %p126
      $region14: #{tpu_custom_call.1} parent=5 // pred_check_branch
        %129 = sbr.rel (%p127) target = $region16
      $region15: #{tpu_custom_call.1} parent=5 // pred_region
        // Predicated region
        $region17: #{tpu_custom_call.1} parent=15 // pred_check
          %p130 = pneg %p51
        $region18: #{tpu_custom_call.1} parent=15 // pred_check_branch
          %132 = sbr.rel (%p130) target = $region20
        $region19: #{tpu_custom_call.1} parent=15 // pred_region
          %s133 = sand.u32 %s41, 1
          %s134 = scalar_lea.sflag [#allocation4], %s133
          %s135 = sand.u32 %s41, 1
          %s136 = smul.addr %s135, 8
          %s137 = scalar_lea.vmem [#allocation3], %s136
          %s138 = smul.u32 2, %s25
          %s140 = ssub.s32 128, 128
          %141 = vsyncadd %s134, %s140
          %s142 = smul.addr %s24, 2
          %s143 = sadd.s32 %s138, %s142
          %s144 = smul.addr %s143, 64
          %s145 = scalar_lea.hbm %s0, %s144
          %s147 = sshll.u32 %s137, 4
          %s148 = int_to_ptr.vmem [resolvable:$true] %s147
          %150 = dma.hbm_to_vmem [thread:$0]  %s145, 128, %s148, %s134
        $region20: #{tpu_custom_call.1} parent=15 // pred_fallthru
          _
        // Predicated region
        $region21: #{tpu_custom_call.1} parent=15 // pred_check
          %p151 = pneg %p79
        $region22: #{tpu_custom_call.1} parent=15 // pred_check_branch
          %153 = sbr.rel (%p151) target = $region24
        $region23: #{tpu_custom_call.1} parent=15 // pred_region
          %s154 = sand.u32 %s69, 1
          %s155 = scalar_lea.sflag [#allocation7], %s154
          %s156 = sand.u32 %s69, 1
          %s157 = smul.addr %s156, 2
          %s158 = scalar_lea.vmem [#allocation6], %s157
          %s159 = smul.u32 2, %s25
          %s161 = ssub.s32 32, 32
          %162 = vsyncadd %s155, %s161
          %s163 = smul.addr %s24, 2
          %s164 = sadd.s32 %s159, %s163
          %s165 = smul.addr %s164, 16
          %s166 = scalar_lea.hbm %s1, %s165
          %s168 = sshll.u32 %s158, 4
          %s169 = int_to_ptr.vmem [resolvable:$true] %s168
          %171 = dma.hbm_to_vmem [thread:$0]  %s166, 32, %s169, %s155
        $region24: #{tpu_custom_call.1} parent=15 // pred_fallthru
          _
      $region16: #{tpu_custom_call.1} parent=5 // pred_fallthru
        _
      %p172 = scmp.le.s32.totalorder 1, %s17
      %p173 = scmp.lt.s32.totalorder %s17, 3
      %p174 = pnand %p172, %p173
      %p175 = pneg %p174
      // Predicated region
      $region25: #{tpu_custom_call.1} parent=5 // pred_check
        _
      $region26: #{tpu_custom_call.1} parent=5 // pred_check_branch
        %177 = sbr.rel (%p174) target = $region28
      $region27: #{tpu_custom_call.1} parent=5 // pred_region
        %s178 = ssub.s32 %s17, 1
        %s179 = sand.u32 %s44, 1
        %s180 = scalar_lea.sflag [#allocation4], %s179
        %s181 = sand.u32 %s44, 1
        %s182 = smul.addr %s181, 8
        %s183 = scalar_lea.vmem [#allocation3], %s182
        // Predicated region
        $region29: #{tpu_custom_call.1} parent=27 // pred_check
          %p184 = pneg %p57
        $region30: #{tpu_custom_call.1} parent=27 // pred_check_branch
          %186 = sbr.rel (%p184) target = $region32
        $region31: #{tpu_custom_call.1} parent=27 // pred_region
          %187 = dma.done %s180, 128
        $region32: #{tpu_custom_call.1} parent=27 // pred_fallthru
          _
        %s188 = sand.u32 %s72, 1
        %s189 = scalar_lea.sflag [#allocation7], %s188
        %s190 = sand.u32 %s72, 1
        %s191 = smul.addr %s190, 2
        %s192 = scalar_lea.vmem [#allocation6], %s191
        // Predicated region
        $region33: #{tpu_custom_call.1} parent=27 // pred_check
          %p193 = pneg %p85
        $region34: #{tpu_custom_call.1} parent=27 // pred_check_branch
          %195 = sbr.rel (%p193) target = $region36
        $region35: #{tpu_custom_call.1} parent=27 // pred_region
          %196 = dma.done %s189, 32
        $region36: #{tpu_custom_call.1} parent=27 // pred_fallthru
          _
        %s197 = sand.u32 %s44, 1
        %s198 = scalar_lea.sflag [#allocation4], %s197
        %s199 = sand.u32 %s44, 1
        %s200 = smul.addr %s199, 8
        %s201 = scalar_lea.vmem [#allocation3], %s200
        %p202 = pneg %p57
        %p203 = pneg %p54
        %s204 = sand.u32 %s72, 1
        %s205 = scalar_lea.sflag [#allocation7], %s204
        %s206 = sand.u32 %s72, 1
        %s207 = smul.addr %s206, 2
        %s208 = scalar_lea.vmem [#allocation6], %s207
        %p209 = pneg %p85
        %p210 = pneg %p82
        %p211 = pneg %p111
        %p212 = pneg %p108
        %s213 = sand.u32 %s98, 1
        %s214 = scalar_lea.sflag [#allocation5], %s213
        %s215 = sand.u32 %s98, 1
        %s216 = smul.addr %s215, 12
        %s217 = scalar_lea.vmem [#allocation8], %s216
        %s218 = smul.u32 2, %s27
        %s219 = smul.u32 2, %s27
        %p220 = scmp.eq.s32.totalorder %s27, 0
        // Predicated region
        $region37: #{tpu_custom_call.1} parent=27 // pred_check
          %p221 = pneg %p220
        $region38: #{tpu_custom_call.1} parent=27 // pred_check_branch
          %223 = sbr.rel (%p221) target = $region40
        $region39: #{tpu_custom_call.1} parent=27 // pred_region
          %224 = vst [vmem:[#allocation2] sm:$0xff] 0.0
          %225 = vst [vmem:[#allocation2 + $0x8] sm:$0xff] 0.0
          %226 = vst [vmem:[#allocation2 + $0x10] sm:$0xff] 0.0
        $region40: #{tpu_custom_call.1} parent=27 // pred_fallthru
          _
        %v227 = vld [vmem:[%s183] sm:$0xff]
        %v229 = vcombine.high %v227, %v227
        %vm231 = vcmask 1043456
        %v232 = vsel %vm231, %v227, -inf
        %v233 = vrot.slane %v232, 4
        %v234 = vmax.f32 %v232, %v233
        %v235 = vrot.slane %v234, 2
        %v236 = vmax.f32 %v234, %v235
        %v237 = vrot.slane %v236, 1
        %v238 = vmax.f32 %v236, %v237
        %v239 = vsel %vm231, %v229, -inf
        %v240 = vrot.slane %v239, 4
        %v241 = vmax.f32 %v239, %v240
        %v242 = vrot.slane %v241, 2
        %v243 = vmax.f32 %v241, %v242
        %v244 = vrot.slane %v243, 1
        %v245 = vmax.f32 %v243, %v244
        %v248 = vcombine.low %v238, %v245
        %v250 = vsub.f32 %v227, %v248
        %v251 = vmul.f32 %v250, 1.442695
        %v252 = vpow.pop %v251
        %v254 = vcombine.high %v252, %v252
        %v256 = vsel %vm231, %v252, 0.0
        %v257 = vrot.slane %v256, 4
        %v258 = vadd.f32 %v256, %v257
        %v259 = vrot.slane %v258, 2
        %v260 = vadd.f32 %v258, %v259
        %v261 = vrot.slane %v260, 1
        %v262 = vadd.f32 %v260, %v261
        %v263 = vsel %vm231, %v254, 0.0
        %v264 = vrot.slane %v263, 4
        %v265 = vadd.f32 %v263, %v264
        %v266 = vrot.slane %v265, 2
        %v267 = vadd.f32 %v265, %v266
        %v268 = vrot.slane %v267, 1
        %v269 = vadd.f32 %v267, %v268
        %v270 = vrcp.pop %v262
        %v271 = vrcp.pop %v269
        %v274 = vcombine.low %v270, %v271
        %v276 = vmul.f32 %v252, %v274
        %v277 = vld [vmem:[%s192] sm:$0x3]
        %v278 = vlaneseq
        %v279 = vshrl.u32 %v278, 7
        %v280 = vlaneseq
        %v281 = vshrl.u32 %v280, 7
        %v282 = vsub.s32 0, %v281
        %v283 = vrot.slane %v277, %v282
        %v284 = vlaneseq
        %v285 = vshrl.u32 %v284, 7
        %v286 = vsub.s32 1, %v285
        %v287 = vrot.slane %v277, %v286
        %vm288 = vcmp.eq.s32.totalorder %v279, %v283
        %vm289 = vcmp.eq.s32.totalorder %v279, %v287
        %v290 = vsel %vm288, 1, 0
        %v291 = vsel %vm289, 1, 0
        %v292 = vcvt.s32.f32 %v290
        %v293 = vcvt.s32.f32 %v291
        %v294 = vld [vmem:[#allocation2] sm:$0xff]
        %v297 = vcombine.low %v292, %v293
        %v299 = vmul.f32 %v276, %v297
        %v300 = vadd.f32 %v294, %v299
        %301 = vst [vmem:[#allocation2] sm:$0xff] %v300
        %s302 = scalar_lea.vmem [#allocation2], 8
        %v303 = vld [vmem:[%s302] sm:$0xff]
        %v304 = vadd.f32 %v303, %v276
        %305 = vst [vmem:[%s302] sm:$0xff] %v304
        %s306 = scalar_lea.vmem [#allocation2], 16
        %v307 = vld [vmem:[%s306] sm:$0xff]
        %v308 = vadd.f32 %v307, %v297
        %309 = vst [vmem:[%s306] sm:$0xff] %v308
        // Predicated region
        $region41: #{tpu_custom_call.1} parent=27 // pred_check
          %p310 = pneg %p220
        $region42: #{tpu_custom_call.1} parent=27 // pred_check_branch
          %312 = sbr.rel (%p310) target = $region44
        $region43: #{tpu_custom_call.1} parent=27 // pred_region
          %v313 = vld [vmem:[#allocation2] sm:$0xf]
          %v314 = vld [vmem:[#allocation2 + $0x8] sm:$0xf]
          %v315 = vld [vmem:[#allocation2 + $0x10] sm:$0xf]
          %v316 = vld [vmem:[#allocation2 + $0x4] sm:$0xf]
          %v317 = vld [vmem:[#allocation2 + $0xc] sm:$0xf]
          %v318 = vld [vmem:[#allocation2 + $0x14] sm:$0xf]
          %v319 = vadd.f32 %v313, %v316
          %v320 = vadd.f32 %v314, %v317
          %v321 = vadd.f32 %v315, %v318
          %322 = vst [vmem:[%s217] sm:$0xf] %v319
          %323 = vst [vmem:[%s217 + $0x4] sm:$0xf] %v320
          %324 = vst [vmem:[%s217 + $0x8] sm:$0xf] %v321
        $region44: #{tpu_custom_call.1} parent=27 // pred_fallthru
          _
        %s325 = sand.u32 %s98, 1
        %s326 = scalar_lea.sflag [#allocation5], %s325
        %s327 = sand.u32 %s98, 1
        %s328 = smul.addr %s327, 12
        %s329 = scalar_lea.vmem [#allocation8], %s328
        // Predicated region
        $region45: #{tpu_custom_call.1} parent=27 // pred_check
          %p330 = pneg %p108
        $region46: #{tpu_custom_call.1} parent=27 // pred_check_branch
          %332 = sbr.rel (%p330) target = $region48
        $region47: #{tpu_custom_call.1} parent=27 // pred_region
          %s334 = ssub.s32 192, 192
          %335 = vsyncadd %s326, %s334
          %s336 = smul.addr %s26, 3
          %s337 = smul.addr %s336, 64
          %s338 = scalar_lea.hbm %s2, %s337
          %s339 = sshll.u32 %s329, 4
          %s340 = int_to_ptr.vmem [resolvable:$true] %s339
          %345 = dma.vmem_to_hbm [thread:$0]  %s340, 192, %s338, %s326, 64, 64, 4
        $region48: #{tpu_custom_call.1} parent=27 // pred_fallthru
          _
      $region28: #{tpu_custom_call.1} parent=5 // pred_fallthru
        _
      %p346 = scmp.le.s32.totalorder 2, %s17
      // Predicated region
      $region49: #{tpu_custom_call.1} parent=5 // pred_check
        %p347 = pneg %p346
      $region50: #{tpu_custom_call.1} parent=5 // pred_check_branch
        %349 = sbr.rel (%p347) target = $region52
      $region51: #{tpu_custom_call.1} parent=5 // pred_region
        %s350 = ssub.s32 %s17, 2
        // Predicated region
        $region53: #{tpu_custom_call.1} parent=51 // pred_check
          %p351 = pneg %p114
        $region54: #{tpu_custom_call.1} parent=51 // pred_check_branch
          %353 = sbr.rel (%p351) target = $region56
        $region55: #{tpu_custom_call.1} parent=51 // pred_region
          %s354 = sand.u32 %s99, 1
          %s355 = scalar_lea.sflag [#allocation5], %s354
          %s356 = sand.u32 %s99, 1
          %s357 = smul.addr %s356, 12
          %s358 = scalar_lea.vmem [#allocation8], %s357
          %359 = dma.done %s355, 192
        $region56: #{tpu_custom_call.1} parent=51 // pred_fallthru
          _
      $region52: #{tpu_custom_call.1} parent=5 // pred_fallthru
        _
    $region6: #{tpu_custom_call.1} parent=1 // loop_footer
      %s21 = sadd.s32 1, %s17
    $region7: #{tpu_custom_call.1} parent=1 // loop_footer_branch
      %16 = sbr.rel target = $region3
    $region8: #{tpu_custom_call.1} parent=1 // loop_exit
      _
    %360 = vsyncpa [#allocation4], 1
    %s361 = scalar_lea.sflag [#allocation4], 1
    %362 = vsyncpa %s361, 1
    %363 = vsyncpa [#allocation7], 1
    %s364 = scalar_lea.sflag [#allocation7], 1
    %365 = vsyncpa %s364, 1
    %366 = vsyncpa [#allocation5], 1
    %s367 = scalar_lea.sflag [#allocation5], 1
    %368 = vsyncpa %s367, 1

</llo_original>
